<compile_context>
chip_gen: v7x
topology: tpu7x:2x2x1
jax: 0.10.0
libtpu: 0.0.40
codegen_flags: <defaults>
</compile_context>

<pallas_src>
import math
import jax
import jax.numpy as jnp
from jax.experimental import pallas as pl
from jax.experimental.pallas import tpu as pltpu

NC = 10            # num classes
ANCHOR_T = 4.0
CN, CP = 0.05, 0.95
EPS = 1e-7


def _round_up(x, m):
    return ((x + m - 1) // m) * m


# ---------------------------------------------------------------------------
# Pallas kernel 1: sum(softplus(pred_obj)) over the full prediction map.
# Single input stream, big lane-dense tiles, no cross-step accumulator: each grid
# step writes a (1,128) per-lane partial; JAX reduces the tiny partials array.
# ---------------------------------------------------------------------------
def obj_softplus_sum(pred_obj):
    """sum over all grid cells of BCEWithLogits(pred_obj, 0) == softplus(pred_obj)."""
    lanes = 128
    x = pred_obj.reshape(-1)                       # keep native dtype (bf16 stays bf16)
    n = x.shape[0]                                 # static python int
    rows = -(-n // lanes)
    tr = min(1024, _round_up(rows, 16))            # big tiles (mem-bound); 16 keeps bf16 packing happy
    rows_p = _round_up(rows, tr)                   # no partial blocks
    total = rows_p * lanes
    if total != n:
        # softplus(-1e4) == 0 exactly in f32 -> padded elements contribute nothing,
        # so the kernel needs no index mask / iota.
        x = jnp.pad(x, (0, total - n), constant_values=-1e4)
    x = x.reshape(rows_p, lanes)
    nblk = rows_p // tr

    def kernel(x_ref, o_ref):
        xv = x_ref[...].astype(jnp.float32)
        sp = jnp.maximum(xv, 0.0) + jnp.log1p(jnp.exp(-jnp.abs(xv)))   # BCE(x, 0)
        o_ref[...] = jnp.sum(sp, axis=0, keepdims=True).reshape(1, 1, lanes)

    partials = pl.pallas_call(
        kernel,
        out_shape=jax.ShapeDtypeStruct((nblk, 1, lanes), jnp.float32),
        grid=(nblk,),
        in_specs=[pl.BlockSpec((tr, lanes), lambda i: (i, 0))],
        out_specs=pl.BlockSpec((1, 1, lanes), lambda i: (i, 0, 0)),
        compiler_params=pltpu.CompilerParams(dimension_semantics=("parallel",)),
    )(x)
    return jnp.sum(partials)


# ---------------------------------------------------------------------------
# Pallas kernel 2: per-matched-target compute, lane-dense layout.
#   box slab   (8, Mp)  rows = px,py,pw,ph, tx,ty,tw,th   (targets along lanes)
#   v          (1, Mp)  CIoU aspect term (precomputed: arctan not guaranteed in Mosaic)
#   pcls/tcls  (NC, Mp) classes on sublanes, targets on lanes
#   outputs:   iou_row (clamped CIoU), lbox_row (masked 1-ciou), lcls_row (masked BCE sum)
# Single invocation (no grid); Mp is a multiple of 128.
# ---------------------------------------------------------------------------
def _target_kernel(box_ref, v_ref, pcls_ref, tcls_ref, mask_ref,
                   iou_ref, lbox_ref, lcls_ref):
    bx = box_ref[...].astype(jnp.float32)              # (8, Mp)
    valid = mask_ref[...] > 0.0                        # (1, Mp)

    x1, y1, w1, h1 = bx[0:1, :], bx[1:2, :], bx[2:3, :], bx[3:4, :]
    x2, y2, w2, h2 = bx[4:5, :], bx[5:6, :], bx[6:7, :], bx[7:8, :]

    b1x1, b1x2 = x1 - w1 * 0.5, x1 + w1 * 0.5
    b1y1, b1y2 = y1 - h1 * 0.5, y1 + h1 * 0.5
    b2x1, b2x2 = x2 - w2 * 0.5, x2 + w2 * 0.5
    b2y1, b2y2 = y2 - h2 * 0.5, y2 + h2 * 0.5

    iw = jnp.maximum(jnp.minimum(b1x2, b2x2) - jnp.maximum(b1x1, b2x1), 0.0)
    ih = jnp.maximum(jnp.minimum(b1y2, b2y2) - jnp.maximum(b1y1, b2y1), 0.0)
    inter = iw * ih
    union = w1 * h1 + w2 * h2 - inter + EPS
    iou = inter / union

    cw = jnp.maximum(b1x2, b2x2) - jnp.minimum(b1x1, b2x1)
    ch = jnp.maximum(b1y2, b2y2) - jnp.minimum(b1y1, b2y1)
    c2 = cw * cw + ch * ch + EPS
    rho2 = ((b2x1 + b2x2 - b1x1 - b1x2) ** 2 +
            (b2y1 + b2y2 - b1y1 - b1y2) ** 2) * 0.25
    v = v_ref[...]                                     # (1, Mp)
    # TODO(synk): torch computes alpha under no_grad(); forward value is identical, but if
    # this loss is ever differentiated, alpha must be wrapped in stop_gradient.
    alpha = v / (v - iou + (1.0 + EPS))
    ciou = iou - (rho2 / c2 + v * alpha)

    iou_ref[...] = jnp.where(valid, jnp.maximum(ciou, 0.0), 0.0)       # objectness targets
    lbox_ref[...] = jnp.where(valid, 1.0 - ciou, 0.0)                  # lbox terms

    pc = pcls_ref[...]                                 # (NC, Mp)
    tc = tcls_ref[...]
    bce = jnp.maximum(pc, 0.0) - pc * tc + jnp.log1p(jnp.exp(-jnp.abs(pc)))
    lcls_ref[...] = jnp.sum(jnp.where(valid, bce, 0.0), axis=0, keepdims=True)


def target_losses(box_slab, v_slab, pcls_slab, tcls_slab, mask_slab):
    Mp = box_slab.shape[1]
    vspec = pl.BlockSpec(memory_space=pltpu.MemorySpace.VMEM)
    return pl.pallas_call(
        _target_kernel,
        out_shape=(jax.ShapeDtypeStruct((1, Mp), jnp.float32),
                   jax.ShapeDtypeStruct((1, Mp), jnp.float32),
                   jax.ShapeDtypeStruct((1, Mp), jnp.float32)),
        in_specs=[vspec] * 5,
        out_specs=(vspec, vspec, vspec),
    )(box_slab, v_slab, pcls_slab, tcls_slab, mask_slab)


# ---------------------------------------------------------------------------
# build_targets: fixed-capacity (5 * na * nt rows) masked version of the
# dynamic boolean filtering done by the PyTorch code (plain-JAX glue).
# ---------------------------------------------------------------------------
def build_targets(pred_shape, targets, anchors):
    bs, na, gy, gx, no = pred_shape
    nt = targets.shape[0]
    targets = targets.astype(jnp.float32)
    anchors = anchors.astype(jnp.float32)
    gain = jnp.array([1.0, 1.0, gx, gy, gx, gy, 1.0], jnp.float32)
    ai = jnp.broadcast_to(jnp.arange(na, dtype=jnp.float32)[:, None], (na, nt))
    t_all = jnp.concatenate(
        [jnp.broadcast_to(targets[None], (na, nt, 6)), ai[..., None]], axis=-1)  # (na, nt, 7)
    g = 0.5
    off = jnp.array([[0, 0], [1, 0], [0, 1], [-1, 0], [0, -1]], jnp.float32) * g

    t = t_all * gain
    gwh = t[..., 4:6]
    r = gwh / anchors[:, None, :]
    anchor_ok = jnp.max(jnp.maximum(r, 1.0 / r), axis=2) < ANCHOR_T     # (na, nt)

    gxy = t[..., 2:4]
    gxy_inv = gain[2:4] - gxy
    jk = (gxy % 1.0 < g) & (gxy > 1.0)
    lm = (gxy_inv % 1.0 < g) & (gxy_inv > 1.0)
    offset_ok = jnp.stack(
        [jnp.ones_like(jk[..., 0]), jk[..., 0], jk[..., 1], lm[..., 0], lm[..., 1]],
        axis=0)                                                 # (5, na, nt)
    valid = offset_ok & anchor_ok[None]

    t5 = jnp.broadcast_to(t[None], (5, na, nt, 7)).reshape(-1, 7)
    offs = jnp.broadcast_to(off[:, None, None, :], (5, na, nt, 2)).reshape(-1, 2)
    mask = valid.reshape(-1)

    b = t5[:, 0].astype(jnp.int32)
    c = t5[:, 1].astype(jnp.int32)
    gxy_f = t5[:, 2:4]
    gwh_f = t5[:, 4:6]
    a = t5[:, 6].astype(jnp.int32)
    gij = jnp.trunc(gxy_f - offs).astype(jnp.int32)   # torch .long() truncates toward zero
    # reproduces the module's own convention: gj, gi = gij.T ; clamp with dims 2, 3
    gj = jnp.clip(gij[:, 0], 0, gy - 1)
    gi = jnp.clip(gij[:, 1], 0, gx - 1)
    tbox = jnp.concatenate([gxy_f - gij.astype(jnp.float32), gwh_f], axis=-1)
    anch = anchors[a]
    return (b, a, gj, gi), c, tbox, anch, mask


# ---------------------------------------------------------------------------
# Full forward pass of the `Loss` module.
# ---------------------------------------------------------------------------
def yolo_loss(pred, targets, anchors):
    bs, na, gy, gx, no = pred.shape
    if targets.shape[0] == 0:                               # matches torch: everything stays 0
        z = jnp.zeros((), jnp.float32)
        return jnp.zeros((1,), jnp.float32), jnp.stack([z, z, z])

    (b, a, gj, gi), tcls, tbox, anch, mask = build_targets(pred.shape, targets, anchors)
    M = b.shape[0]
    Mp = _round_up(M, 128)                                  # pad targets to lane multiple

    matched = pred[b, a, gj, gi].astype(jnp.float32)        # (M, no) gather (JAX glue)
    pxy = jax.nn.sigmoid(matched[:, 0:2]) * 2.0 - 0.5
    pwh = (2.0 * jax.nn.sigmoid(matched[:, 2:4])) ** 2 * anch
    pbox = jnp.concatenate([pxy, pwh], axis=-1)
    pobj = matched[:, 4]
    pcls = matched[:, 5:]
    tboxf = tbox.astype(jnp.float32)

    # TODO(synk): jnp.arctan has no guaranteed Mosaic lowering; the tiny per-target CIoU
    # aspect-ratio term `v` (M elements) is computed in plain JAX and fed to the kernel.
    v = (4.0 / math.pi ** 2) * (jnp.arctan(tboxf[:, 2] / tboxf[:, 3]) -
                                jnp.arctan(pbox[:, 2] / pbox[:, 3])) ** 2

    # class targets: cn everywhere, cp at the ground-truth class row (classes on sublanes)
    cls_tgt = jnp.where(jnp.arange(NC)[:, None] == tcls[None, :], CP, CN).astype(jnp.float32)
    maskf = mask.astype(jnp.float32)

    def pad_lanes(x2d):
        return jnp.pad(x2d, ((0, 0), (0, Mp - M)))

    box_slab = pad_lanes(jnp.concatenate([pbox.T, tboxf.T], axis=0))   # (8, Mp)
    v_slab = pad_lanes(v[None, :])                                     # (1, Mp)
    pcls_slab = pad_lanes(pcls.T)                                      # (NC, Mp)
    tcls_slab = pad_lanes(cls_tgt)                                     # (NC, Mp)
    mask_slab = pad_lanes(maskf[None, :])                              # (1, Mp)

    iou_row, lbox_row, lcls_row = target_losses(
        box_slab, v_slab, pcls_slab, tcls_slab, mask_slab)
    iou = iou_row[0, :M]                                    # clamped CIoU, 0 where invalid
    lbox_sum = jnp.sum(lbox_row)
    lcls_sum = jnp.sum(lcls_row)

    n = jnp.sum(maskf)
    has_t = n > 0
    lbox = jnp.where(has_t, lbox_sum / jnp.maximum(n, 1.0), 0.0)
    lcls = jnp.where(has_t, lcls_sum / jnp.maximum(n * NC, 1.0), 0.0)

    # ---- lobj: softplus-sum over the full obj map + sparse per-cell correction ----
    # mean(BCE(x, tobj)) = [sum softplus(x) - sum_{unique matched cells} x * iou_final] / N
    # (gr == 1.0 and sort_obj_iou == False -> those branches are no-ops.)
    # TODO(synk): pred[..., 4] is a stride-(5+NC) channel slice; the head layout is fixed by
    # the module interface, so the XLA copy it implies cannot be removed here.
    sp_sum = obj_softplus_sum(pred[..., 4])

    # deterministic last-write-wins dedupe of duplicate (b, a, gj, gi) cells
    lin = ((b * na + a) * gy + gj) * gx + gi
    lin = jnp.where(mask, lin, -1)
    order = jnp.argsort(lin, stable=True)
    lin_s = lin[order]
    last_in_group = jnp.concatenate([lin_s[1:] != lin_s[:-1], jnp.array([True])])
    winner = jnp.zeros((M,), dtype=bool).at[order].set(last_in_group & (lin_s >= 0))
    corr = jnp.sum(jnp.where(winner, pobj * iou, 0.0))

    n_cells = bs * na * gy * gx
    lobj = jnp.where(has_t, (sp_sum - corr) / n_cells, 0.0)

    loss = (lbox + lcls + lobj) * bs
    return jnp.reshape(loss, (1,)), jnp.stack([lbox, lcls, lobj])


if __name__ == "__main__":
    key = jax.random.PRNGKey(0)
    k1, k2, k3, k4 = jax.random.split(key, 4)

    bs, na, gs = 2, 3, 16
    pred = jax.random.normal(k1, (bs, na, gs, gs, 5 + NC), jnp.float32)

    nt = 8
    img = jax.random.randint(k2, (nt,), 0, bs).astype(jnp.float32)
    cls = jax.random.randint(k3, (nt,), 0, NC).astype(jnp.float32)
    xywh = jax.random.uniform(k4, (nt, 4), minval=0.1, maxval=0.6)
    targets = jnp.concatenate([img[:, None], cls[:, None], xywh], axis=1)

    # deterministic synthetic anchors (grid units), shape (na, 2)
    anchors = jnp.array([[1.25, 1.625], [2.0, 3.75], [4.125, 2.875]], jnp.float32)

    loss, parts = jax.jit(yolo_loss)(pred, targets, anchors)
    jax.block_until_ready((loss, parts))
    print("KERNEL_OK")
</pallas_src>

<mosaic_0001>
module attributes {stable_mosaic.version = 11 : i64} {
  func.func @kernel(%arg0: i32, %arg1: memref<16x128xf32, #tpu.memory_space<vmem>>, %arg2: memref<1x1x128xf32, #tpu.memory_space<vmem>>) attributes {dimension_semantics = [#tpu.dimension_semantics<parallel>], iteration_bounds = array<i64: 1>, scalar_prefetch = 0 : i64, scratch_operands = 0 : i64, tpu.core_type = #tpu.core_type<tc>, window_params = [{transform_indices = @transform_0, window_bounds = array<i64: 16, 128>}, {transform_indices = @transform_1, window_bounds = array<i64: 1, 1, 128>}]} {
    %c0 = arith.constant 0 : index
    %c0_0 = arith.constant 0 : index
    %0 = vector.load %arg1[%c0, %c0_0] : memref<16x128xf32, #tpu.memory_space<vmem>>, vector<16x128xf32>
    %cst = arith.constant 0.000000e+00 : f32
    %1 = vector.broadcast %cst : f32 to vector<16x128xf32>
    %2 = arith.maximumf %0, %1 : vector<16x128xf32>
    %3 = math.absf %0 : vector<16x128xf32>
    %cst_1 = arith.constant 0.000000e+00 : f32
    %4 = vector.broadcast %cst_1 : f32 to vector<16x128xf32>
    %5 = arith.subf %4, %3 : vector<16x128xf32>
    %6 = math.exp %5 : vector<16x128xf32>
    %7 = math.log1p %6 : vector<16x128xf32>
    %8 = arith.addf %2, %7 : vector<16x128xf32>
    %cst_2 = arith.constant dense<0.000000e+00> : vector<128xf32>
    %9 = vector.multi_reduction <add>, %8, %cst_2 [0] : vector<16x128xf32> to vector<128xf32>
    %10 = vector.shape_cast %9 : vector<128xf32> to vector<1x128xf32>
    %11 = vector.shape_cast %10 : vector<1x128xf32> to vector<1x1x128xf32>
    %c0_3 = arith.constant 0 : index
    %c0_4 = arith.constant 0 : index
    %c0_5 = arith.constant 0 : index
    %12 = vector.load %arg2[%c0_3, %c0_4, %c0_5] : memref<1x1x128xf32, #tpu.memory_space<vmem>>, vector<1x1x128xf32>
    tpu.vector_store %arg2[%c0_3, %c0_4, %c0_5], %11 {strides = array<i32>} : memref<1x1x128xf32, #tpu.memory_space<vmem>>, vector<1x1x128xf32>,
    return
  }
  func.func @transform_0(%arg0: i32) -> (i32, i32) {
    %c0_i32 = arith.constant 0 : i32
    %c0_i32_0 = arith.constant 0 : i32
    return %arg0, %c0_i32 : i32, i32
  }
  func.func @transform_1(%arg0: i32) -> (i32, i32, i32) {
    %c0_i32 = arith.constant 0 : i32
    %c0_i32_0 = arith.constant 0 : i32
    %c0_i32_1 = arith.constant 0 : i32
    return %arg0, %c0_i32, %c0_i32_0 : i32, i32, i32
  }
}

module attributes {stable_mosaic.version = 11 : i64} {
  func.func @_target_kernel(%arg0: memref<8x128xf32, #tpu.memory_space<vmem>>, %arg1: memref<1x128xf32, #tpu.memory_space<vmem>>, %arg2: memref<10x128xf32, #tpu.memory_space<vmem>>, %arg3: memref<10x128xf32, #tpu.memory_space<vmem>>, %arg4: memref<1x128xf32, #tpu.memory_space<vmem>>, %arg5: memref<1x128xf32, #tpu.memory_space<vmem>>, %arg6: memref<1x128xf32, #tpu.memory_space<vmem>>, %arg7: memref<1x128xf32, #tpu.memory_space<vmem>>) attributes {dimension_semantics = [], scalar_prefetch = 0 : i64, scratch_operands = 0 : i64, tpu.core_type = #tpu.core_type<tc>} {
    %c0 = arith.constant 0 : index
    %c0_0 = arith.constant 0 : index
    %0 = vector.load %arg0[%c0, %c0_0] : memref<8x128xf32, #tpu.memory_space<vmem>>, vector<8x128xf32>
    %c0_1 = arith.constant 0 : index
    %c0_2 = arith.constant 0 : index
    %1 = vector.load %arg4[%c0_1, %c0_2] : memref<1x128xf32, #tpu.memory_space<vmem>>, vector<1x128xf32>
    %cst = arith.constant 0.000000e+00 : f32
    %2 = vector.broadcast %cst : f32 to vector<1x128xf32>
    %3 = arith.cmpf ogt, %1, %2 : vector<1x128xf32>
    %4 = vector.extract_strided_slice %0 {offsets = [0, 0], sizes = [1, 128], strides = [1, 1]} : vector<8x128xf32> to vector<1x128xf32>
    %5 = vector.extract_strided_slice %0 {offsets = [1, 0], sizes = [1, 128], strides = [1, 1]} : vector<8x128xf32> to vector<1x128xf32>
    %6 = vector.extract_strided_slice %0 {offsets = [2, 0], sizes = [1, 128], strides = [1, 1]} : vector<8x128xf32> to vector<1x128xf32>
    %7 = vector.extract_strided_slice %0 {offsets = [3, 0], sizes = [1, 128], strides = [1, 1]} : vector<8x128xf32> to vector<1x128xf32>
    %8 = vector.extract_strided_slice %0 {offsets = [4, 0], sizes = [1, 128], strides = [1, 1]} : vector<8x128xf32> to vector<1x128xf32>
    %9 = vector.extract_strided_slice %0 {offsets = [5, 0], sizes = [1, 128], strides = [1, 1]} : vector<8x128xf32> to vector<1x128xf32>
    %10 = vector.extract_strided_slice %0 {offsets = [6, 0], sizes = [1, 128], strides = [1, 1]} : vector<8x128xf32> to vector<1x128xf32>
    %11 = vector.extract_strided_slice %0 {offsets = [7, 0], sizes = [1, 128], strides = [1, 1]} : vector<8x128xf32> to vector<1x128xf32>
    %cst_3 = arith.constant 5.000000e-01 : f32
    %12 = vector.broadcast %cst_3 : f32 to vector<1x128xf32>
    %13 = arith.mulf %6, %12 : vector<1x128xf32>
    %14 = arith.subf %4, %13 : vector<1x128xf32>
    %cst_4 = arith.constant 5.000000e-01 : f32
    %15 = vector.broadcast %cst_4 : f32 to vector<1x128xf32>
    %16 = arith.mulf %6, %15 : vector<1x128xf32>
    %17 = arith.addf %4, %16 : vector<1x128xf32>
    %cst_5 = arith.constant 5.000000e-01 : f32
    %18 = vector.broadcast %cst_5 : f32 to vector<1x128xf32>
    %19 = arith.mulf %7, %18 : vector<1x128xf32>
    %20 = arith.subf %5, %19 : vector<1x128xf32>
    %cst_6 = arith.constant 5.000000e-01 : f32
    %21 = vector.broadcast %cst_6 : f32 to vector<1x128xf32>
    %22 = arith.mulf %7, %21 : vector<1x128xf32>
    %23 = arith.addf %5, %22 : vector<1x128xf32>
    %cst_7 = arith.constant 5.000000e-01 : f32
    %24 = vector.broadcast %cst_7 : f32 to vector<1x128xf32>
    %25 = arith.mulf %10, %24 : vector<1x128xf32>
    %26 = arith.subf %8, %25 : vector<1x128xf32>
    %cst_8 = arith.constant 5.000000e-01 : f32
    %27 = vector.broadcast %cst_8 : f32 to vector<1x128xf32>
    %28 = arith.mulf %10, %27 : vector<1x128xf32>
    %29 = arith.addf %8, %28 : vector<1x128xf32>
    %cst_9 = arith.constant 5.000000e-01 : f32
    %30 = vector.broadcast %cst_9 : f32 to vector<1x128xf32>
    %31 = arith.mulf %11, %30 : vector<1x128xf32>
    %32 = arith.subf %9, %31 : vector<1x128xf32>
    %cst_10 = arith.constant 5.000000e-01 : f32
    %33 = vector.broadcast %cst_10 : f32 to vector<1x128xf32>
    %34 = arith.mulf %11, %33 : vector<1x128xf32>
    %35 = arith.addf %9, %34 : vector<1x128xf32>
    %36 = arith.minimumf %17, %29 : vector<1x128xf32>
    %37 = arith.maximumf %14, %26 : vector<1x128xf32>
    %38 = arith.subf %36, %37 : vector<1x128xf32>
    %cst_11 = arith.constant 0.000000e+00 : f32
    %39 = vector.broadcast %cst_11 : f32 to vector<1x128xf32>
    %40 = arith.maximumf %38, %39 : vector<1x128xf32>
    %41 = arith.minimumf %23, %35 : vector<1x128xf32>
    %42 = arith.maximumf %20, %32 : vector<1x128xf32>
    %43 = arith.subf %41, %42 : vector<1x128xf32>
    %cst_12 = arith.constant 0.000000e+00 : f32
    %44 = vector.broadcast %cst_12 : f32 to vector<1x128xf32>
    %45 = arith.maximumf %43, %44 : vector<1x128xf32>
    %46 = arith.mulf %40, %45 : vector<1x128xf32>
    %47 = arith.mulf %6, %7 : vector<1x128xf32>
    %48 = arith.mulf %10, %11 : vector<1x128xf32>
    %49 = arith.addf %47, %48 : vector<1x128xf32>
    %50 = arith.subf %49, %46 : vector<1x128xf32>
    %cst_13 = arith.constant 1.000000e-07 : f32
    %51 = vector.broadcast %cst_13 : f32 to vector<1x128xf32>
    %52 = arith.addf %50, %51 : vector<1x128xf32>
    %53 = arith.divf %46, %52 : vector<1x128xf32>
    %54 = arith.maximumf %17, %29 : vector<1x128xf32>
    %55 = arith.minimumf %14, %26 : vector<1x128xf32>
    %56 = arith.subf %54, %55 : vector<1x128xf32>
    %57 = arith.maximumf %23, %35 : vector<1x128xf32>
    %58 = arith.minimumf %20, %32 : vector<1x128xf32>
    %59 = arith.subf %57, %58 : vector<1x128xf32>
    %60 = arith.mulf %56, %56 : vector<1x128xf32>
    %61 = arith.mulf %59, %59 : vector<1x128xf32>
    %62 = arith.addf %60, %61 : vector<1x128xf32>
    %cst_14 = arith.constant 1.000000e-07 : f32
    %63 = vector.broadcast %cst_14 : f32 to vector<1x128xf32>
    %64 = arith.addf %62, %63 : vector<1x128xf32>
    %65 = arith.addf %26, %29 : vector<1x128xf32>
    %66 = arith.subf %65, %14 : vector<1x128xf32>
    %67 = arith.subf %66, %17 : vector<1x128xf32>
    %68 = arith.mulf %67, %67 : vector<1x128xf32>
    %69 = arith.addf %32, %35 : vector<1x128xf32>
    %70 = arith.subf %69, %20 : vector<1x128xf32>
    %71 = arith.subf %70, %23 : vector<1x128xf32>
    %72 = arith.mulf %71, %71 : vector<1x128xf32>
    %73 = arith.addf %68, %72 : vector<1x128xf32>
    %cst_15 = arith.constant 2.500000e-01 : f32
    %74 = vector.broadcast %cst_15 : f32 to vector<1x128xf32>
    %75 = arith.mulf %73, %74 : vector<1x128xf32>
    %c0_16 = arith.constant 0 : index
    %c0_17 = arith.constant 0 : index
    %76 = vector.load %arg1[%c0_16, %c0_17] : memref<1x128xf32, #tpu.memory_space<vmem>>, vector<1x128xf32>
    %77 = arith.subf %76, %53 : vector<1x128xf32>
    %cst_18 = arith.constant 1.00000012 : f32
    %78 = vector.broadcast %cst_18 : f32 to vector<1x128xf32>
    %79 = arith.addf %77, %78 : vector<1x128xf32>
    %80 = arith.divf %76, %79 : vector<1x128xf32>
    %81 = arith.divf %75, %64 : vector<1x128xf32>
    %82 = arith.mulf %76, %80 : vector<1x128xf32>
    %83 = arith.addf %81, %82 : vector<1x128xf32>
    %84 = arith.subf %53, %83 : vector<1x128xf32>
    %cst_19 = arith.constant 0.000000e+00 : f32
    %85 = vector.broadcast %cst_19 : f32 to vector<1x128xf32>
    %86 = arith.maximumf %84, %85 : vector<1x128xf32>
    %cst_20 = arith.constant 0.000000e+00 : f32
    %87 = vector.broadcast %cst_20 : f32 to vector<1x128xf32>
    %88 = arith.select %3, %86, %87 : vector<1x128xi1>, vector<1x128xf32>
    %c0_21 = arith.constant 0 : index
    %c0_22 = arith.constant 0 : index
    %89 = vector.load %arg5[%c0_21, %c0_22] : memref<1x128xf32, #tpu.memory_space<vmem>>, vector<1x128xf32>
    tpu.vector_store %arg5[%c0_21, %c0_22], %88 {strides = array<i32>} : memref<1x128xf32, #tpu.memory_space<vmem>>, vector<1x128xf32>,
    %cst_23 = arith.constant 1.000000e+00 : f32
    %90 = vector.broadcast %cst_23 : f32 to vector<1x128xf32>
    %91 = arith.subf %90, %84 : vector<1x128xf32>
    %cst_24 = arith.constant 0.000000e+00 : f32
    %92 = vector.broadcast %cst_24 : f32 to vector<1x128xf32>
    %93 = arith.select %3, %91, %92 : vector<1x128xi1>, vector<1x128xf32>
    %c0_25 = arith.constant 0 : index
    %c0_26 = arith.constant 0 : index
    %94 = vector.load %arg6[%c0_25, %c0_26] : memref<1x128xf32, #tpu.memory_space<vmem>>, vector<1x128xf32>
    tpu.vector_store %arg6[%c0_25, %c0_26], %93 {strides = array<i32>} : memref<1x128xf32, #tpu.memory_space<vmem>>, vector<1x128xf32>,
    %c0_27 = arith.constant 0 : index
    %c0_28 = arith.constant 0 : index
    %95 = vector.load %arg2[%c0_27, %c0_28] : memref<10x128xf32, #tpu.memory_space<vmem>>, vector<10x128xf32>
    %c0_29 = arith.constant 0 : index
    %c0_30 = arith.constant 0 : index
    %96 = vector.load %arg3[%c0_29, %c0_30] : memref<10x128xf32, #tpu.memory_space<vmem>>, vector<10x128xf32>
    %cst_31 = arith.constant 0.000000e+00 : f32
    %97 = vector.broadcast %cst_31 : f32 to vector<10x128xf32>
    %98 = arith.maximumf %95, %97 : vector<10x128xf32>
    %99 = arith.mulf %95, %96 : vector<10x128xf32>
    %100 = arith.subf %98, %99 : vector<10x128xf32>
    %101 = math.absf %95 : vector<10x128xf32>
    %cst_32 = arith.constant 0.000000e+00 : f32
    %102 = vector.broadcast %cst_32 : f32 to vector<10x128xf32>
    %103 = arith.subf %102, %101 : vector<10x128xf32>
    %104 = math.exp %103 : vector<10x128xf32>
    %105 = math.log1p %104 : vector<10x128xf32>
    %106 = arith.addf %100, %105 : vector<10x128xf32>
    %cst_33 = arith.constant 0.000000e+00 : f32
    %107 = vector.shape_cast %3 : vector<1x128xi1> to vector<1x128xi1>
    %108 = vector.broadcast %107 : vector<1x128xi1> to vector<10x128xi1>
    %109 = vector.broadcast %cst_33 : f32 to vector<10x128xf32>
    %110 = arith.select %108, %106, %109 : vector<10x128xi1>, vector<10x128xf32>
    %cst_34 = arith.constant dense<0.000000e+00> : vector<128xf32>
    %111 = vector.multi_reduction <add>, %110, %cst_34 [0] : vector<10x128xf32> to vector<128xf32>
    %112 = vector.shape_cast %111 : vector<128xf32> to vector<1x128xf32>
    %c0_35 = arith.constant 0 : index
    %c0_36 = arith.constant 0 : index
    %113 = vector.load %arg7[%c0_35, %c0_36] : memref<1x128xf32, #tpu.memory_space<vmem>>, vector<1x128xf32>
    tpu.vector_store %arg7[%c0_35, %c0_36], %112 {strides = array<i32>} : memref<1x128xf32, #tpu.memory_space<vmem>>, vector<1x128xf32>,
    return
  }
}

</mosaic_0001>

<llo_original>
// kernel: squeeze.31
$region0: #{squeeze.31}
  %s0 = inlined_call_operand.vmem [shape: f32[2,3,16,16,1], index: 0, kind: input, shape index: {}]
  %s1 = inlined_call_operand.vmem [shape: f32[1536], index: 1, kind: output, shape index: {}]
  %v2 = vld [vmem:[%s0] ss:$8 sm:$0xf]
  %v3 = vld [vmem:[%s0] ss:$8 sm:$0xf0]
  %vm4 = vcmask 1047556
  %v5 = vsel %vm4, %v3, %v2
  %vm6 = vcmask 130048
  %7 = vst.msk [vmem:[%s1] sm:$0xff] %vm6, %v5
  %s8 = scalar_lea.vmem %s0, 64
  %v9 = vld [vmem:[%s8] ss:$8 sm:$0xf]
  %vm10 = vcmask 130048
  %s11 = scalar_lea.vmem %s1, 8
  %12 = vst.msk [vmem:[%s11] sm:$0xf] %vm10, %v9
  %s13 = scalar_lea.vmem %s0, 7
  %v14 = vld [vmem:[%s13] ss:$8 sm:$0xf]
  %s15 = scalar_lea.vmem %s0, 7
  %v16 = vld [vmem:[%s15] ss:$8 sm:$0xf0]
  %vm17 = vcmask 1047556
  %v18 = vsel %vm17, %v16, %v14
  %19 = vrot.lane.b32.xlu0 %v18, 112
  %v20 = vpop.permute.xlu0 %19
  %vm21 = vcmask 1048448
  %22 = vst.msk [vmem:[%s1] sm:$0xff] %vm21, %v20
  %s23 = scalar_lea.vmem %s0, 71
  %v24 = vld [vmem:[%s23] ss:$8 sm:$0xf]
  %25 = vrot.lane.b32.xlu0 %v24, 112
  %v26 = vpop.permute.xlu0 %25
  %vm27 = vcmask 1048448
  %s28 = scalar_lea.vmem %s1, 8
  %29 = vst.msk [vmem:[%s28] sm:$0xf] %vm27, %v26
  %s30 = scalar_lea.vmem %s0, 6
  %v31 = vld [vmem:[%s30] ss:$8 sm:$0xf]
  %s32 = scalar_lea.vmem %s0, 6
  %v33 = vld [vmem:[%s32] ss:$8 sm:$0xf0]
  %vm34 = vcmask 1047556
  %v35 = vsel %vm34, %v33, %v31
  %36 = vrot.lane.b32.xlu0 %v35, 96
  %v37 = vpop.permute.xlu0 %36
  %vm38 = vcmask 917248
  %39 = vst.msk [vmem:[%s1] sm:$0xff] %vm38, %v37
  %s40 = scalar_lea.vmem %s0, 70
  %v41 = vld [vmem:[%s40] ss:$8 sm:$0xf]
  %42 = vrot.lane.b32.xlu0 %v41, 96
  %v43 = vpop.permute.xlu0 %42
  %vm44 = vcmask 917248
  %s45 = scalar_lea.vmem %s1, 8
  %46 = vst.msk [vmem:[%s45] sm:$0xf] %vm44, %v43
  %s47 = scalar_lea.vmem %s0, 5
  %v48 = vld [vmem:[%s47] ss:$8 sm:$0xf]
  %s49 = scalar_lea.vmem %s0, 5
  %v50 = vld [vmem:[%s49] ss:$8 sm:$0xf0]
  %vm51 = vcmask 1047556
  %v52 = vsel %vm51, %v50, %v48
  %53 = vrot.lane.b32.xlu0 %v52, 80
  %v54 = vpop.permute.xlu0 %53
  %vm55 = vcmask 786048
  %56 = vst.msk [vmem:[%s1] sm:$0xff] %vm55, %v54
  %s57 = scalar_lea.vmem %s0, 69
  %v58 = vld [vmem:[%s57] ss:$8 sm:$0xf]
  %59 = vrot.lane.b32.xlu0 %v58, 80
  %v60 = vpop.permute.xlu0 %59
  %vm61 = vcmask 786048
  %s62 = scalar_lea.vmem %s1, 8
  %63 = vst.msk [vmem:[%s62] sm:$0xf] %vm61, %v60
  %s64 = scalar_lea.vmem %s0, 4
  %v65 = vld [vmem:[%s64] ss:$8 sm:$0xf]
  %s66 = scalar_lea.vmem %s0, 4
  %v67 = vld [vmem:[%s66] ss:$8 sm:$0xf0]
  %vm68 = vcmask 1047556
  %v69 = vsel %vm68, %v67, %v65
  %70 = vrot.lane.b32.xlu0 %v69, 64
  %v71 = vpop.permute.xlu0 %70
  %vm72 = vcmask 654848
  %73 = vst.msk [vmem:[%s1] sm:$0xff] %vm72, %v71
  %s74 = scalar_lea.vmem %s0, 68
  %v75 = vld [vmem:[%s74] ss:$8 sm:$0xf]
  %76 = vrot.lane.b32.xlu0 %v75, 64
  %v77 = vpop.permute.xlu0 %76
  %vm78 = vcmask 654848
  %s79 = scalar_lea.vmem %s1, 8
  %80 = vst.msk [vmem:[%s79] sm:$0xf] %vm78, %v77
  %s81 = scalar_lea.vmem %s0, 3
  %v82 = vld [vmem:[%s81] ss:$8 sm:$0xf]
  %s83 = scalar_lea.vmem %s0, 3
  %v84 = vld [vmem:[%s83] ss:$8 sm:$0xf0]
  %vm85 = vcmask 1047556
  %v86 = vsel %vm85, %v84, %v82
  %87 = vrot.lane.b32.xlu0 %v86, 48
  %v88 = vpop.permute.xlu0 %87
  %vm89 = vcmask 523648
  %90 = vst.msk [vmem:[%s1] sm:$0xff] %vm89, %v88
  %s91 = scalar_lea.vmem %s0, 67
  %v92 = vld [vmem:[%s91] ss:$8 sm:$0xf]
  %93 = vrot.lane.b32.xlu0 %v92, 48
  %v94 = vpop.permute.xlu0 %93
  %vm95 = vcmask 523648
  %s96 = scalar_lea.vmem %s1, 8
  %97 = vst.msk [vmem:[%s96] sm:$0xf] %vm95, %v94
  %s98 = scalar_lea.vmem %s0, 2
  %v99 = vld [vmem:[%s98] ss:$8 sm:$0xf]
  %s100 = scalar_lea.vmem %s0, 2
  %v101 = vld [vmem:[%s100] ss:$8 sm:$0xf0]
  %vm102 = vcmask 1047556
  %v103 = vsel %vm102, %v101, %v99
  %104 = vrot.lane.b32.xlu0 %v103, 32
  %v105 = vpop.permute.xlu0 %104
  %vm106 = vcmask 392448
  %107 = vst.msk [vmem:[%s1] sm:$0xff] %vm106, %v105
  %s108 = scalar_lea.vmem %s0, 66
  %v109 = vld [vmem:[%s108] ss:$8 sm:$0xf]
  %110 = vrot.lane.b32.xlu0 %v109, 32
  %v111 = vpop.permute.xlu0 %110
  %vm112 = vcmask 392448
  %s113 = scalar_lea.vmem %s1, 8
  %114 = vst.msk [vmem:[%s113] sm:$0xf] %vm112, %v111
  %s115 = scalar_lea.vmem %s0, 1
  %v116 = vld [vmem:[%s115] ss:$8 sm:$0xf]
  %s117 = scalar_lea.vmem %s0, 1
  %v118 = vld [vmem:[%s117] ss:$8 sm:$0xf0]
  %vm119 = vcmask 1047556
  %v120 = vsel %vm119, %v118, %v116
  %121 = vrot.lane.b32.xlu0 %v120, 16
  %v122 = vpop.permute.xlu0 %121
  %vm123 = vcmask 261248
  %124 = vst.msk [vmem:[%s1] sm:$0xff] %vm123, %v122
  %s125 = scalar_lea.vmem %s0, 65
  %v126 = vld [vmem:[%s125] ss:$8 sm:$0xf]
  %127 = vrot.lane.b32.xlu0 %v126, 16
  %v128 = vpop.permute.xlu0 %127
  %vm129 = vcmask 261248
  %s130 = scalar_lea.vmem %s1, 8
  %131 = vst.msk [vmem:[%s130] sm:$0xf] %vm129, %v128

// kernel: yolo_loss.3
$region0: #{yolo_loss.3}
  #allocation0 [shape = 'u32[]', space=smem, size = 0x4, offset = 0x4, fixed_abs, tag = 'smem constant byte address 0x4 - core index']
  #allocation1 [shape = 'u32[144,128]{1,0:T(1,128)}', space=vmem, size = 0x12000, scoped, tag = 'internal scratch']
  %s0 = inlined_call_operand.vmem [shape: f32[16,128], index: 0, kind: input, shape index: {}]
  %s1 = inlined_call_operand.vmem [shape: f32[1,1,128], index: 1, kind: output, shape index: {}]
  %s2 = sld [smem:[#allocation0]]
  $region14: #{yolo_loss.3} parent=0
    _
  %s4 = ssub.s32 1, %s2
  %s5 = scalar_select 0, %s4, %s2
  // Predicated region
  $region2: #{yolo_loss.3} parent=0 // pred_check
    _
  $region3: #{yolo_loss.3} parent=0 // pred_check_branch
    %7 = sbr.rel (0) target = $region5
  $region4: #{yolo_loss.3} parent=0 // pred_region
    _
  $region5: #{yolo_loss.3} parent=0 // pred_fallthru
    _
  %v8 = vld [vmem:[%s0] sm:$0xff]
  %v9 = vld [vmem:[%s0 + $0x8] sm:$0xff]
  %v10 = vmax.f32 %v8, 0.0
  %v11 = vmax.f32 %v9, 0.0
  %v12 = vand.u32 2147483647, %v8
  %v13 = vand.u32 2147483647, %v9
  %v14 = vsub.f32 0.0, %v12
  %v15 = vsub.f32 0.0, %v13
  %v16 = vmul.f32 %v14, 1.442695
  %v17 = vpow.pop %v16
  %v18 = vmul.f32 %v15, 1.442695
  %v19 = vpow.pop %v18
  %v20 = vadd.f32 %v17, 1.0
  %v21 = vlog2.pop %v20
  %v22 = vmul.f32 %v21, 0.6931472
  %v23 = vmul.f32 -0.5, %v17
  %v24 = vadd.f32 %v23, 1.0
  %v25 = vmul.f32 %v24, %v17
  %v26 = vand.u32 2147483647, %v17
  %vm27 = vcmp.lt.f32.partialorder %v26, 0.0004427343
  %v28 = vsel %vm27, %v25, %v22
  %v29 = vadd.f32 %v19, 1.0
  %v30 = vlog2.pop %v29
  %v31 = vmul.f32 %v30, 0.6931472
  %v32 = vmul.f32 -0.5, %v19
  %v33 = vadd.f32 %v32, 1.0
  %v34 = vmul.f32 %v33, %v19
  %v35 = vand.u32 2147483647, %v19
  %vm36 = vcmp.lt.f32.partialorder %v35, 0.0004427343
  %v37 = vsel %vm36, %v34, %v31
  %v38 = vadd.f32 %v10, %v28
  %v39 = vadd.f32 %v11, %v37
  %v40 = vadd.f32 %v38, %v39
  %v41 = vrot.slane %v40, 4
  %v42 = vadd.f32 %v40, %v41
  %v43 = vrot.slane %v42, 2
  %v44 = vadd.f32 %v42, %v43
  %v45 = vrot.slane %v44, 1
  %v46 = vadd.f32 %v44, %v45
  %47 = vst [vmem:[%s1] sm:$0x1] %v46
  // Predicated region
  $region6: #{yolo_loss.3} parent=0 // pred_check
    _
  $region7: #{yolo_loss.3} parent=0 // pred_check_branch
    %49 = sbr.rel (0) target = $region9
  $region8: #{yolo_loss.3} parent=0 // pred_region
    _
  $region9: #{yolo_loss.3} parent=0 // pred_fallthru
    _
  // Predicated region
  $region10: #{yolo_loss.3} parent=0 // pred_check
    _
  $region11: #{yolo_loss.3} parent=0 // pred_check_branch
    %51 = sbr.rel (0) target = $region13
  $region12: #{yolo_loss.3} parent=0 // pred_region
    _
  $region13: #{yolo_loss.3} parent=0 // pred_fallthru
    _

// kernel: yolo_loss.2
$region0: #{yolo_loss.2}
  #allocation0 [shape = 'u32[]', space=smem, size = 0x4, offset = 0x4, fixed_abs, tag = 'smem constant byte address 0x4 - core index']
  #allocation1 [shape = 'u32[144,128]{1,0:T(1,128)}', space=vmem, size = 0x12000, scoped, tag = 'internal scratch']
  %s0 = inlined_call_operand.vmem [shape: f32[8,128], index: 0, kind: input, shape index: {}]
  %s1 = inlined_call_operand.vmem [shape: f32[1,128], index: 1, kind: input, shape index: {}]
  %s2 = inlined_call_operand.vmem [shape: f32[10,128], index: 2, kind: input, shape index: {}]
  %s3 = inlined_call_operand.vmem [shape: f32[10,128], index: 3, kind: input, shape index: {}]
  %s4 = inlined_call_operand.vmem [shape: f32[1,128], index: 4, kind: input, shape index: {}]
  %s5 = inlined_call_operand.vmem [shape: f32[1,128], index: 5, kind: output, shape index: {0}]
  %s6 = inlined_call_operand.vmem [shape: f32[1,128], index: 6, kind: output, shape index: {1}]
  %s7 = inlined_call_operand.vmem [shape: f32[1,128], index: 7, kind: output, shape index: {2}]
  %8 = xla_tuple %s5, %s6, %s7
  %s9 = sld [smem:[#allocation0]]
  $region46: #{yolo_loss.2} parent=0
    _
  %s11 = ssub.s32 1, %s9
  %s12 = scalar_select 0, %s11, %s9
  // Predicated region
  $region2: #{yolo_loss.2} parent=0 // pred_check
    _
  $region3: #{yolo_loss.2} parent=0 // pred_check_branch
    %14 = sbr.rel (0) target = $region5
  $region4: #{yolo_loss.2} parent=0 // pred_region
    _
  $region5: #{yolo_loss.2} parent=0 // pred_fallthru
    _
  // Predicated region
  $region6: #{yolo_loss.2} parent=0 // pred_check
    _
  $region7: #{yolo_loss.2} parent=0 // pred_check_branch
    %16 = sbr.rel (0) target = $region9
  $region8: #{yolo_loss.2} parent=0 // pred_region
    _
  $region9: #{yolo_loss.2} parent=0 // pred_fallthru
    _
  // Predicated region
  $region10: #{yolo_loss.2} parent=0 // pred_check
    _
  $region11: #{yolo_loss.2} parent=0 // pred_check_branch
    %18 = sbr.rel (0) target = $region13
  $region12: #{yolo_loss.2} parent=0 // pred_region
    _
  $region13: #{yolo_loss.2} parent=0 // pred_fallthru
    _
  // Predicated region
  $region14: #{yolo_loss.2} parent=0 // pred_check
    _
  $region15: #{yolo_loss.2} parent=0 // pred_check_branch
    %20 = sbr.rel (0) target = $region17
  $region16: #{yolo_loss.2} parent=0 // pred_region
    _
  $region17: #{yolo_loss.2} parent=0 // pred_fallthru
    _
  // Predicated region
  $region18: #{yolo_loss.2} parent=0 // pred_check
    _
  $region19: #{yolo_loss.2} parent=0 // pred_check_branch
    %22 = sbr.rel (0) target = $region21
  $region20: #{yolo_loss.2} parent=0 // pred_region
    _
  $region21: #{yolo_loss.2} parent=0 // pred_fallthru
    _
  %v23 = vld [vmem:[%s0] sm:$0xff]
  %v24 = vld [vmem:[%s4] sm:$0x1]
  %vm25 = vcmp.gt.f32.partialorder %v24, 0.0
  %v26 = vmul.f32 %v23, 0.5
  %v28 = vrot.slane %v26, 2
  %v30 = vsub.f32 %v23, %v28
  %v31 = vadd.f32 %v23, %v28
  %v33 = vrot.slane %v31, 4
  %v35 = vmin.f32 %v31, %v33
  %v37 = vrot.slane %v30, 4
  %v39 = vmax.f32 %v30, %v37
  %v40 = vsub.f32 %v35, %v39
  %v41 = vmax.f32 %v40, 0.0
  %v43 = vrot.slane %v41, 1
  %v45 = vmul.f32 %v41, %v43
  %v47 = vrot.slane %v23, 1
  %v49 = vmul.f32 %v23, %v47
  %v51 = vrot.slane %v49, 4
  %v53 = vadd.f32 %v49, %v51
  %v55 = vrot.slane %v45, 6
  %v57 = vsub.f32 %v53, %v55
  %v58 = vadd.f32 %v57, 1e-07
  %v60 = vrot.slane %v58, 2
  %v62 = vrcp.pop %v60
  %v63 = vmul.f32 %v45, %v62
  %v64 = vmax.f32 %v31, %v33
  %v65 = vmin.f32 %v30, %v37
  %v66 = vsub.f32 %v64, %v65
  %v67 = vmul.f32 %v66, %v66
  %v69 = vrot.slane %v67, 1
  %v71 = vadd.f32 %v67, %v69
  %v72 = vadd.f32 %v71, 1e-07
  %v73 = vadd.f32 %v30, %v31
  %v74 = vsub.f32 %v73, %v37
  %v75 = vsub.f32 %v74, %v33
  %v76 = vmul.f32 %v75, %v75
  %v78 = vrot.slane %v76, 1
  %v80 = vadd.f32 %v76, %v78
  %v81 = vmul.f32 %v80, 0.25
  %v82 = vld [vmem:[%s1] sm:$0x1]
  %v83 = vsub.f32 %v82, %v63
  %v84 = vadd.f32 %v83, 1.0000001
  %v85 = vrcp.pop %v84
  %v86 = vmul.f32 %v82, %v85
  %v88 = vrot.slane %v72, 4
  %v90 = vrcp.pop %v88
  %v91 = vmul.f32 %v81, %v90
  %v92 = vmul.f32 %v82, %v86
  %v94 = vlaneseq
  %v95 = vshrl.u32 %v94, 7
  %v96 = vsub.s32 0, %v95
  %v97 = vrot.slane %v92, %v96
  %v99 = vadd.f32 %v91, %v97
  %v101 = vrot.slane %v99, 4
  %v103 = vsub.f32 %v63, %v101
  %v104 = vmax.f32 %v103, 0.0
  %v105 = vsel %vm25, %v104, 0.0
  %106 = vst [vmem:[%s5] sm:$0x1] %v105
  %v107 = vsub.f32 1.0, %v103
  %v108 = vsel %vm25, %v107, 0.0
  %109 = vst [vmem:[%s6] sm:$0x1] %v108
  %v110 = vld [vmem:[%s2] sm:$0xff]
  %v111 = vld [vmem:[%s2 + $0x8] sm:$0x3]
  %v112 = vld [vmem:[%s3] sm:$0xff]
  %v113 = vld [vmem:[%s3 + $0x8] sm:$0x3]
  %v114 = vmax.f32 %v110, 0.0
  %v115 = vmax.f32 %v111, 0.0
  %v116 = vmul.f32 %v110, %v112
  %v117 = vmul.f32 %v111, %v113
  %v118 = vsub.f32 %v114, %v116
  %v119 = vsub.f32 %v115, %v117
  %v120 = vand.u32 2147483647, %v110
  %v121 = vand.u32 2147483647, %v111
  %v122 = vsub.f32 0.0, %v120
  %v123 = vsub.f32 0.0, %v121
  %v124 = vmul.f32 %v122, 1.442695
  %v125 = vpow.pop %v124
  %v126 = vmul.f32 %v123, 1.442695
  %v127 = vpow.pop %v126
  %v128 = vadd.f32 %v125, 1.0
  %v129 = vlog2.pop %v128
  %v130 = vmul.f32 %v129, 0.6931472
  %v131 = vmul.f32 -0.5, %v125
  %v132 = vadd.f32 %v131, 1.0
  %v133 = vmul.f32 %v132, %v125
  %v134 = vand.u32 2147483647, %v125
  %vm135 = vcmp.lt.f32.partialorder %v134, 0.0004427343
  %v136 = vsel %vm135, %v133, %v130
  %v137 = vadd.f32 %v127, 1.0
  %v138 = vlog2.pop %v137
  %v139 = vmul.f32 %v138, 0.6931472
  %v140 = vmul.f32 -0.5, %v127
  %v141 = vadd.f32 %v140, 1.0
  %v142 = vmul.f32 %v141, %v127
  %v143 = vand.u32 2147483647, %v127
  %vm144 = vcmp.lt.f32.partialorder %v143, 0.0004427343
  %v145 = vsel %vm144, %v142, %v139
  %v146 = vadd.f32 %v118, %v136
  %v147 = vadd.f32 %v119, %v145
  %v148 = vsel %vm25, 1, 0
  %v149 = vlaneseq
  %v150 = vshrl.u32 %v149, 7
  %v151 = vsub.s32 0, %v150
  %v152 = vrot.slane %v148, %v151
  %vm153 = vcmp.eq.s32.totalorder %v152, 1
  %v154 = vsel %vm153, %v146, 0.0
  %v155 = vsel %vm153, %v147, 0.0
  %vm156 = vcmask 1041408
  %v157 = vsel %vm156, %v155, 0.0
  %v158 = vadd.f32 %v154, %v157
  %v159 = vrot.slane %v158, 4
  %v160 = vadd.f32 %v158, %v159
  %v161 = vrot.slane %v160, 2
  %v162 = vadd.f32 %v160, %v161
  %v163 = vrot.slane %v162, 1
  %v164 = vadd.f32 %v162, %v163
  %165 = vst [vmem:[%s7] sm:$0x1] %v164
  // Predicated region
  $region22: #{yolo_loss.2} parent=0 // pred_check
    _
  $region23: #{yolo_loss.2} parent=0 // pred_check_branch
    %167 = sbr.rel (0) target = $region25
  $region24: #{yolo_loss.2} parent=0 // pred_region
    _
  $region25: #{yolo_loss.2} parent=0 // pred_fallthru
    _
  // Predicated region
  $region26: #{yolo_loss.2} parent=0 // pred_check
    _
  $region27: #{yolo_loss.2} parent=0 // pred_check_branch
    %169 = sbr.rel (0) target = $region29
  $region28: #{yolo_loss.2} parent=0 // pred_region
    _
  $region29: #{yolo_loss.2} parent=0 // pred_fallthru
    _
  // Predicated region
  $region30: #{yolo_loss.2} parent=0 // pred_check
    _
  $region31: #{yolo_loss.2} parent=0 // pred_check_branch
    %171 = sbr.rel (0) target = $region33
  $region32: #{yolo_loss.2} parent=0 // pred_region
    _
  $region33: #{yolo_loss.2} parent=0 // pred_fallthru
    _
  // Predicated region
  $region34: #{yolo_loss.2} parent=0 // pred_check
    _
  $region35: #{yolo_loss.2} parent=0 // pred_check_branch
    %173 = sbr.rel (0) target = $region37
  $region36: #{yolo_loss.2} parent=0 // pred_region
    _
  $region37: #{yolo_loss.2} parent=0 // pred_fallthru
    _
  // Predicated region
  $region38: #{yolo_loss.2} parent=0 // pred_check
    _
  $region39: #{yolo_loss.2} parent=0 // pred_check_branch
    %175 = sbr.rel (0) target = $region41
  $region40: #{yolo_loss.2} parent=0 // pred_region
    _
  $region41: #{yolo_loss.2} parent=0 // pred_fallthru
    _
  // Predicated region
  $region42: #{yolo_loss.2} parent=0 // pred_check
    _
  $region43: #{yolo_loss.2} parent=0 // pred_check_branch
    %177 = sbr.rel (0) target = $region45
  $region44: #{yolo_loss.2} parent=0 // pred_region
    _
  $region45: #{yolo_loss.2} parent=0 // pred_fallthru
    _

</llo_original>
